<compile_context>
chip_gen: v5e
topology: v5e:2x2
jax: 0.10.0
libtpu: 0.0.40
codegen_flags: <defaults>
</compile_context>

<pallas_src>
import functools

import jax
import jax.numpy as jnp
from jax.experimental import pallas as pl
from jax.experimental.pallas import tpu as pltpu


def _label_smoothing_kernel(pred_ref, tgt_ref, out_ref, *, classes, smoothing):
    logits = pred_ref[...].astype(jnp.float32)               # (tn, C)
    tn, c = logits.shape

    # log_softmax pieces along the class (lane) axis.
    m = jnp.max(logits, axis=-1, keepdims=True)              # (tn, 1)
    shifted = logits - m                                      # (tn, C)
    lse = jnp.log(jnp.sum(jnp.exp(shifted), axis=-1, keepdims=True))  # (tn, 1)

    # sum_j logp_j = sum_j shifted_j - C * lse
    sum_logp = jnp.sum(shifted, axis=-1, keepdims=True) - jnp.float32(c) * lse

    # logp at the target index = shifted[target] - lse (one-hot masked row sum).
    class_ids = jax.lax.broadcasted_iota(jnp.int32, (tn, c), 1)
    tgt = tgt_ref[...]                                        # (tn, 1) int32
    shifted_at_tgt = jnp.sum(
        jnp.where(class_ids == tgt, shifted, jnp.float32(0.0)),
        axis=-1, keepdims=True)
    logp_at_tgt = shifted_at_tgt - lse                        # (tn, 1)

    off_val = jnp.float32(smoothing / (classes - 1))
    on_val = jnp.float32(1.0 - smoothing)
    # loss_row = sum(-true_dist * logp) with true_dist = off everywhere except
    # on at target  ==  -(off * sum_logp + (on - off) * logp_target)
    out_ref[...] = -(off_val * sum_logp + (on_val - off_val) * logp_at_tgt)


def label_smoothing_loss(pred, target, *, classes, smoothing=0.1,
                         tile_rows=None, target_block_bytes=2 * 1024 * 1024,
                         vmem_limit_bytes=32 * 1024 * 1024):
    """pred: (N, C) float (f32 or bf16); target: (N,) int. Returns f32 scalar."""
    n, c = pred.shape
    assert c == classes, (c, classes)
    assert classes > 1, "label smoothing needs at least 2 classes"

    itemsize = jnp.dtype(pred.dtype).itemsize

    if tile_rows is None:
        # Largest multiple of 8 whose pred block stays within the byte budget
        # (double-buffered by the pipeline -> 2x this in VMEM), clamped to the
        # (8-padded) batch size so tiny batches don't over-allocate.
        rows = max(8, (target_block_bytes // (c * itemsize)) // 8 * 8)
        n_pad8 = ((n + 7) // 8) * 8
        tile_rows = int(min(rows, n_pad8))
    assert tile_rows % 8 == 0 and tile_rows > 0

    n_tiles = pl.cdiv(n, tile_rows)
    n_pad = n_tiles * tile_rows
    if n_pad != n:
        pred = jnp.pad(pred, ((0, n_pad - n), (0, 0)))
        target = jnp.pad(target, (0, n_pad - n))
    target2d = target.astype(jnp.int32).reshape(n_pad, 1)

    kernel = functools.partial(
        _label_smoothing_kernel, classes=classes, smoothing=smoothing)

    cost = pl.CostEstimate(
        flops=6 * n_pad * c,
        transcendentals=n_pad * c,
        bytes_accessed=n_pad * c * itemsize + n_pad * 4 + n_pad * 4)

    per_row = pl.pallas_call(
        kernel,
        out_shape=jax.ShapeDtypeStruct((n_pad, 1), jnp.float32),
        grid_spec=pltpu.PrefetchScalarGridSpec(
            num_scalar_prefetch=0,
            grid=(n_tiles,),
            in_specs=[
                pl.BlockSpec((tile_rows, c), lambda i: (i, 0)),
                pl.BlockSpec((tile_rows, 1), lambda i: (i, 0)),
            ],
            out_specs=pl.BlockSpec((tile_rows, 1), lambda i: (i, 0)),
        ),
        compiler_params=pltpu.CompilerParams(
            dimension_semantics=("parallel",),
            vmem_limit_bytes=vmem_limit_bytes),
        cost_estimate=cost,
    )(pred, target2d)

    # Padded rows are sliced off; mean over the true batch size.
    return jnp.sum(per_row[:n, 0]) / jnp.float32(n)


def _reference(pred, target, classes, smoothing):
    logp = jax.nn.log_softmax(pred.astype(jnp.float32), axis=-1)
    true_dist = jnp.full_like(logp, smoothing / (classes - 1))
    true_dist = true_dist.at[jnp.arange(pred.shape[0]), target].set(
        1.0 - smoothing)
    return jnp.mean(jnp.sum(-true_dist * logp, axis=-1))


if __name__ == "__main__":
    key = jax.random.PRNGKey(0)
    k1, k2, k3, k4 = jax.random.split(key, 4)

    SMOOTHING = 0.1

    # Case 1: batch multiple of 8, 128 classes, f32.
    N1, C1 = 16, 128
    pred1 = jax.random.normal(k1, (N1, C1), dtype=jnp.float32)
    tgt1 = jax.random.randint(k2, (N1,), 0, C1, dtype=jnp.int32)
    loss1 = jax.block_until_ready(
        label_smoothing_loss(pred1, tgt1, classes=C1, smoothing=SMOOTHING))
    ref1 = _reference(pred1, tgt1, C1, SMOOTHING)
    assert jnp.allclose(loss1, ref1, rtol=1e-5, atol=1e-5), (loss1, ref1)

    # Case 2: ragged batch (padding path) with a small, non-128 class count.
    N2, C2 = 20, 10
    pred2 = jax.random.normal(k3, (N2, C2), dtype=jnp.float32)
    tgt2 = jax.random.randint(k4, (N2,), 0, C2, dtype=jnp.int32)
    loss2 = jax.block_until_ready(
        label_smoothing_loss(pred2, tgt2, classes=C2, smoothing=SMOOTHING))
    ref2 = _reference(pred2, tgt2, C2, SMOOTHING)
    assert jnp.allclose(loss2, ref2, rtol=1e-5, atol=1e-5), (loss2, ref2)

    print("KERNEL_OK")
</pallas_src>

<mosaic_0001>
module attributes {stable_mosaic.version = 11 : i64} {
  func.func @_label_smoothing_kernel(%arg0: i32, %arg1: memref<16x128xf32, #tpu.memory_space<vmem>>, %arg2: memref<16x1xi32, #tpu.memory_space<vmem>>, %arg3: memref<16x1xf32, #tpu.memory_space<vmem>>) attributes {dimension_semantics = [#tpu.dimension_semantics<parallel>], iteration_bounds = array<i64: 1>, scalar_prefetch = 0 : i64, scratch_operands = 0 : i64, tpu.core_type = #tpu.core_type<tc>, window_params = [{transform_indices = @transform_0, window_bounds = array<i64: 16, 128>}, {transform_indices = @transform_1, window_bounds = array<i64: 16, 1>}, {transform_indices = @transform_2, window_bounds = array<i64: 16, 1>}]} {
    %c0 = arith.constant 0 : index
    %c0_0 = arith.constant 0 : index
    %0 = vector.load %arg1[%c0, %c0_0] : memref<16x128xf32, #tpu.memory_space<vmem>>, vector<16x128xf32>
    %cst = arith.constant dense<0xFF800000> : vector<16xf32>
    %1 = vector.multi_reduction <maximumf>, %0, %cst [1] : vector<16x128xf32> to vector<16xf32>
    %2 = vector.shape_cast %1 : vector<16xf32> to vector<16x1xf32>
    %3 = vector.broadcast %2 : vector<16x1xf32> to vector<16x128xf32>
    %4 = arith.subf %0, %3 : vector<16x128xf32>
    %5 = math.exp %4 : vector<16x128xf32>
    %cst_1 = arith.constant dense<0.000000e+00> : vector<16xf32>
    %6 = vector.multi_reduction <add>, %5, %cst_1 [1] : vector<16x128xf32> to vector<16xf32>
    %7 = vector.shape_cast %6 : vector<16xf32> to vector<16x1xf32>
    %8 = math.log %7 : vector<16x1xf32>
    %cst_2 = arith.constant dense<0.000000e+00> : vector<16xf32>
    %9 = vector.multi_reduction <add>, %4, %cst_2 [1] : vector<16x128xf32> to vector<16xf32>
    %10 = vector.shape_cast %9 : vector<16xf32> to vector<16x1xf32>
    %cst_3 = arith.constant 1.280000e+02 : f32
    %11 = vector.broadcast %cst_3 : f32 to vector<16x1xf32>
    %12 = arith.mulf %11, %8 : vector<16x1xf32>
    %13 = arith.subf %10, %12 : vector<16x1xf32>
    %14 = tpu.iota {dimensions = array<i32: 1>} : vector<16x128xi32>
    %c0_4 = arith.constant 0 : index
    %c0_5 = arith.constant 0 : index
    %15 = vector.load %arg2[%c0_4, %c0_5] : memref<16x1xi32, #tpu.memory_space<vmem>>, vector<16x1xi32>
    %16 = vector.broadcast %15 : vector<16x1xi32> to vector<16x128xi32>
    %17 = arith.cmpi eq, %14, %16 : vector<16x128xi32>
    %cst_6 = arith.constant 0.000000e+00 : f32
    %18 = vector.broadcast %cst_6 : f32 to vector<16x128xf32>
    %19 = arith.select %17, %4, %18 : vector<16x128xi1>, vector<16x128xf32>
    %cst_7 = arith.constant dense<0.000000e+00> : vector<16xf32>
    %20 = vector.multi_reduction <add>, %19, %cst_7 [1] : vector<16x128xf32> to vector<16xf32>
    %21 = vector.shape_cast %20 : vector<16xf32> to vector<16x1xf32>
    %22 = arith.subf %21, %8 : vector<16x1xf32>
    %cst_8 = arith.constant 7.87401571E-4 : f32
    %23 = vector.broadcast %cst_8 : f32 to vector<16x1xf32>
    %24 = arith.mulf %23, %13 : vector<16x1xf32>
    %cst_9 = arith.constant 0.899999976 : f32
    %cst_10 = arith.constant 7.87401571E-4 : f32
    %25 = arith.subf %cst_9, %cst_10 : f32
    %26 = vector.broadcast %25 : f32 to vector<16x1xf32>
    %27 = arith.mulf %26, %22 : vector<16x1xf32>
    %28 = arith.addf %24, %27 : vector<16x1xf32>
    %cst_11 = arith.constant 0.000000e+00 : f32
    %29 = vector.broadcast %cst_11 : f32 to vector<16x1xf32>
    %30 = arith.subf %29, %28 : vector<16x1xf32>
    %c0_12 = arith.constant 0 : index
    %c0_13 = arith.constant 0 : index
    %31 = vector.load %arg3[%c0_12, %c0_13] : memref<16x1xf32, #tpu.memory_space<vmem>>, vector<16x1xf32>
    tpu.vector_store %arg3[%c0_12, %c0_13], %30 {strides = array<i32>} : memref<16x1xf32, #tpu.memory_space<vmem>>, vector<16x1xf32>,
    return
  }
  func.func @transform_0(%arg0: i32) -> (i32, i32) {
    %c0_i32 = arith.constant 0 : i32
    %c0_i32_0 = arith.constant 0 : i32
    return %arg0, %c0_i32 : i32, i32
  }
  func.func @transform_1(%arg0: i32) -> (i32, i32) {
    %c0_i32 = arith.constant 0 : i32
    %c0_i32_0 = arith.constant 0 : i32
    return %arg0, %c0_i32 : i32, i32
  }
  func.func @transform_2(%arg0: i32) -> (i32, i32) {
    %c0_i32 = arith.constant 0 : i32
    %c0_i32_0 = arith.constant 0 : i32
    return %arg0, %c0_i32 : i32, i32
  }
}

</mosaic_0001>

<llo_original>
// kernel: tpu_custom_call.1
$region0: #{tpu_custom_call.1}
  #allocation0 [shape = 'u32[]', space=smem, size = 0x4, offset = 0x4, fixed_abs, tag = 'smem constant byte address 0x4 - core index']
  #allocation1 [shape = 'u32[72,128]{1,0:T(1,128)}', space=vmem, size = 0x9000, scoped, tag = 'internal scratch']
  %s0 = inlined_call_operand.vmem [shape: f32[16,128], index: 0, kind: input, shape index: {}]
  %s1 = inlined_call_operand.vmem [shape: s32[16,1], index: 1, kind: input, shape index: {}]
  %s2 = inlined_call_operand.vmem [shape: f32[16,1], index: 2, kind: output, shape index: {}]
  %s3 = sld [smem:[#allocation0]]
  $region18: #{tpu_custom_call.1} parent=0
    _
  %s5 = ssub.s32 1, %s3
  %s6 = scalar_select 0, %s5, %s3
  // Predicated region
  $region2: #{tpu_custom_call.1} parent=0 // pred_check
    _
  $region3: #{tpu_custom_call.1} parent=0 // pred_check_branch
    %8 = sbr.rel (0) target = $region5
  $region4: #{tpu_custom_call.1} parent=0 // pred_region
    _
  $region5: #{tpu_custom_call.1} parent=0 // pred_fallthru
    _
  // Predicated region
  $region6: #{tpu_custom_call.1} parent=0 // pred_check
    _
  $region7: #{tpu_custom_call.1} parent=0 // pred_check_branch
    %10 = sbr.rel (0) target = $region9
  $region8: #{tpu_custom_call.1} parent=0 // pred_region
    _
  $region9: #{tpu_custom_call.1} parent=0 // pred_fallthru
    _
  %v11 = vld [vmem:[%s0] sm:$0xff]
  %v12 = vld [vmem:[%s0 + $0x8] sm:$0xff]
  %13 = vmax.xlane.f32.xlu0 %v11
  %v14 = vpop.xlane.xlu0 %13
  %15 = vmax.xlane.f32.xlu0 %v12
  %v16 = vpop.xlane.xlu0 %15
  %v17 = vsub.f32 %v11, %v14
  %v18 = vsub.f32 %v12, %v16
  %v19 = vmul.f32 %v17, 1.442695
  %v20 = vpow.pop %v19
  %v21 = vmul.f32 %v18, 1.442695
  %v22 = vpow.pop %v21
  %23 = vadd.xlane.f32.xlu0 %v20
  %v24 = vpop.xlane.xlu0 %23
  %25 = vadd.xlane.f32.xlu0 %v22
  %v26 = vpop.xlane.xlu0 %25
  %v27 = vlog2.pop %v24
  %v28 = vmul.f32 %v27, 0.6931472
  %v29 = vlog2.pop %v26
  %v30 = vmul.f32 %v29, 0.6931472
  %31 = vadd.xlane.f32.xlu0 %v17
  %v32 = vpop.xlane.xlu0 %31
  %33 = vadd.xlane.f32.xlu0 %v18
  %v34 = vpop.xlane.xlu0 %33
  %v35 = vmul.f32 %v28, 128.0
  %v36 = vmul.f32 %v30, 128.0
  %v37 = vsub.f32 %v32, %v35
  %v38 = vsub.f32 %v34, %v36
  %v39 = vlaneseq
  %v40 = vand.u32 %v39, 127
  %v41 = vld [vmem:[%s1] sm:$0xff]
  %v42 = vld [vmem:[%s1 + $0x8] sm:$0xff]
  %43 = vset.pattern.permute.xlu0 0
  %44 = vperm.xlu0 %43, %v41
  %v45 = vpop.permute.xlu0 %44
  %46 = vset.pattern.permute.xlu0 0
  %47 = vperm.xlu0 %46, %v42
  %v48 = vpop.permute.xlu0 %47
  %vm49 = vcmp.eq.s32.totalorder %v40, %v45
  %vm50 = vcmp.eq.s32.totalorder %v40, %v48
  %v51 = vsel %vm49, %v17, 0.0
  %v52 = vsel %vm50, %v18, 0.0
  %53 = vadd.xlane.f32.xlu0 %v51
  %v54 = vpop.xlane.xlu0 %53
  %55 = vadd.xlane.f32.xlu0 %v52
  %v56 = vpop.xlane.xlu0 %55
  %v57 = vsub.f32 %v54, %v28
  %v58 = vsub.f32 %v56, %v30
  %v59 = vmul.f32 %v37, 0.0007874016
  %v60 = vmul.f32 %v38, 0.0007874016
  %v61 = vmul.f32 %v57, 0.8992126
  %v62 = vmul.f32 %v58, 0.8992126
  %v63 = vadd.f32 %v59, %v61
  %v64 = vadd.f32 %v60, %v62
  %v65 = vsub.f32 0.0, %v63
  %v66 = vsub.f32 0.0, %v64
  %vm67 = vcmask 7168
  %68 = vst.msk [vmem:[%s2] sm:$0xff] %vm67, %v65
  %69 = vst.msk [vmem:[%s2 + $0x8] sm:$0xff] %vm67, %v66
  // Predicated region
  $region10: #{tpu_custom_call.1} parent=0 // pred_check
    _
  $region11: #{tpu_custom_call.1} parent=0 // pred_check_branch
    %71 = sbr.rel (0) target = $region13
  $region12: #{tpu_custom_call.1} parent=0 // pred_region
    _
  $region13: #{tpu_custom_call.1} parent=0 // pred_fallthru
    _
  // Predicated region
  $region14: #{tpu_custom_call.1} parent=0 // pred_check
    _
  $region15: #{tpu_custom_call.1} parent=0 // pred_check_branch
    %73 = sbr.rel (0) target = $region17
  $region16: #{tpu_custom_call.1} parent=0 // pred_region
    _
  $region17: #{tpu_custom_call.1} parent=0 // pred_fallthru
    _

</llo_original>
